<compile_context>
chip_gen: v7x
topology: tpu7x:2x2x1
jax: 0.10.0
libtpu: 0.0.40
codegen_flags: <defaults>
</compile_context>

<pallas_src>
import functools

import jax
import jax.numpy as jnp
from jax.experimental import pallas as pl
from jax.experimental.pallas import tpu as pltpu

# Finite stand-in for -inf: exp(_NEG - m) underflows to 0 for any finite m.
_NEG = -1e30

# Scoped-VMEM request: safe on v5e/v6e (128 MiB phys) and v7x (64 MiB phys).
_VMEM_LIMIT_BYTES = 32 * 1024 * 1024
# Headroom for compiler-internal scratch / semaphores / misc.
_VMEM_MARGIN_BYTES = 6 * 1024 * 1024
# Hard cap on rows per grid step (lane-dense (1, tile_n) score row).
_MAX_TILE_N = 32768
# Score-row lanes above which the softmax switches to the tiled two-pass path.
_SOFTMAX_SINGLE_BLOCK_MAX_LANES = 128 * 1024


def _round_up(x, m):
    return (x + m - 1) // m * m


def _pick_tile_n(n, d, itemsize, max_tile_n=None):
    """Rows of x per grid step, sized from lane-PADDED VMEM footprints."""
    d_pad = _round_up(d, 128)          # each x row pads to 128-lane multiples in VMEM
    # Resident small operands (constant index_map; conservatively assume they
    # are double-buffered):  w1t (16, D) -> 16 * d_pad * itemsize per buffer,
    # b1 / w2 are one vreg each.
    resident = 2 * 16 * d_pad * itemsize + 64 * 1024
    budget = _VMEM_LIMIT_BYTES - _VMEM_MARGIN_BYTES - resident
    # Per-row VMEM cost inside the scores pass:
    #   x tile, double-buffered                     : 2 * d_pad * itemsize
    #   hidden (t, 16) f32 pads to 128 lanes, ~2 live copies: 2 * 128 * 4
    #   (1, t) f32 score block pads to 8 sublanes, double-buffered: 2 * 8 * 4
    per_row = 2 * d_pad * itemsize + 2 * 128 * 4 + 2 * 8 * 4
    # TODO(synk): tile the D (contraction) axis too for embedding_dim >> 8K;
    # unnecessary for realistic embedding dims of this module.
    t = (budget // per_row) // 128 * 128
    t = int(max(128, min(t, _MAX_TILE_N)))
    if max_tile_n is not None:
        t = int(max(128, min(t, _round_up(max_tile_n, 128))))
    if n <= t:
        # Single block == full array: no (8,128) constraint, fused fast path.
        return n
    # Keep >= 4 grid steps so megacore sharding (v7x, 2 TCs) and DMA/compute
    # pipelining keep their depth even with very large tiles.
    quarter = _round_up(int(pl.cdiv(n, 4)), 128)
    return int(max(128, min(t, quarter)))


def _mlp_scores(x, w1t, b1, w2):
    """Shared MLP: x (t, D) -> lane-dense scores (1, t), f32 accumulation."""
    # Linear(D, 16): contract x's D against the lane-dense (16, D) weight.
    h = jax.lax.dot_general(
        x, w1t,
        dimension_numbers=(((1,), (1,)), ((), ())),
        preferred_element_type=jnp.float32)                     # (t, 16)
    h = jnp.maximum(h + b1.astype(jnp.float32), 0.0)            # bias + ReLU
    # (Dropout(p=0) is the identity -> omitted.)
    # Linear(16, 1) as a (1,16) x (t,16)^T contraction -> scores directly in
    # lane-major (1, t) layout; no (t, 1) column, no transpose/relayout.
    # b2 is intentionally NOT added: softmax(s + b2) == softmax(s).
    return jax.lax.dot_general(
        w2.astype(jnp.float32), h,
        dimension_numbers=(((1,), (1,)), ((), ())),
        preferred_element_type=jnp.float32)                     # (1, t)


def _fused_kernel(x_ref, w1t_ref, b1_ref, w2_ref, o_ref):
    """Single-tile fast path: scores + stable softmax in one kernel."""
    s = _mlp_scores(x_ref[...], w1t_ref[...], b1_ref[...], w2_ref[...])  # (1, N)
    m = jnp.max(s, axis=1, keepdims=True)
    e = jnp.exp(s - m)
    l = jnp.sum(e, axis=1, keepdims=True)
    o_ref[...] = e * pl.reciprocal(l, approx=False)


def _scores_kernel(x_ref, w1t_ref, b1_ref, w2_ref, s_ref, *, n_valid, tile_n):
    """Per-tile MLP scores, written as a lane-dense (1, tile_n) row."""
    i = pl.program_id(0)
    s_row = _mlp_scores(x_ref[...], w1t_ref[...], b1_ref[...], w2_ref[...])

    last = pl.num_programs(0) - 1

    @pl.when(i < last)
    def _():
        s_ref[...] = s_row

    @pl.when(i == last)
    def _():
        # Mask rows past N (padded tail of the last tile) so the downstream
        # softmax ignores them: exp(_NEG - m) == 0.  Kept as a select.
        lane = jax.lax.broadcasted_iota(jnp.int32, (1, tile_n), 1)
        valid = (i * tile_n + lane) < n_valid
        s_ref[...] = jnp.where(valid, s_row, _NEG)


def _softmax_kernel(s_ref, o_ref, *, n_valid):
    """Stable softmax over the whole (1, n_pad) score row; emit (1, N)."""
    s = s_ref[...]                                   # (1, n_pad) f32
    m = jnp.max(s, axis=1, keepdims=True)
    e = jnp.exp(s - m)                               # masked lanes -> exactly 0
    l = jnp.sum(e, axis=1, keepdims=True)
    inv = pl.reciprocal(l, approx=False)             # one reciprocal, broadcast
    o_ref[...] = (e * inv)[:, :n_valid]


def _softmax_stats_kernel(s_ref, m_ref, l_ref):
    """Online (max, sum-exp) reduction over score chunks ("arbitrary" grid)."""
    i = pl.program_id(0)

    @pl.when(i == 0)
    def _():
        m_ref[...] = jnp.full_like(m_ref, _NEG)
        l_ref[...] = jnp.zeros_like(l_ref)

    s = s_ref[...]                                           # (1, chunk)
    m_prev = m_ref[...]
    m_new = jnp.maximum(m_prev, jnp.max(s, axis=1, keepdims=True))
    l_ref[...] = (l_ref[...] * jnp.exp(m_prev - m_new)
                  + jnp.sum(jnp.exp(s - m_new), axis=1, keepdims=True))
    m_ref[...] = m_new


def _softmax_norm_kernel(s_ref, m_ref, l_ref, o_ref):
    """Normalize one score chunk with the global (m, l) stats."""
    inv = pl.reciprocal(l_ref[...], approx=False)
    o_ref[...] = jnp.exp(s_ref[...] - m_ref[...]) * inv


def sub_user_interaction_attention(
        x, w1, b1, w2, b2=None, *,
        max_tile_n=None,
        softmax_single_block_max_lanes=_SOFTMAX_SINGLE_BLOCK_MAX_LANES):
    """x: (N, D).  w1: (D, 16) (= W1^T), b1: (1, 16), w2: (1, 16) (= W2^T row).

    Returns softmax attention weights of shape (1, N), matching
    SubUserInteractionAttention_Layer_C.forward.  b2 is accepted for parameter
    parity but is mathematically a no-op under the global softmax.
    `max_tile_n` / `softmax_single_block_max_lanes` exist to exercise the
    tiled paths at small test shapes.
    """
    del b2  # softmax-invariant
    N, D = x.shape
    H = w1.shape[1]
    assert x.dtype == w1.dtype, "x and w1 must share a dtype (f32 or bf16)"

    # Lane-dense resident layout for the first-layer weight: (16, D) instead of
    # (D, 16) avoids 8x lane-padding waste in VMEM for large embedding dims.
    w1t = w1.T

    tile_n = _pick_tile_n(N, D, x.dtype.itemsize, max_tile_n)
    num_tiles = int(pl.cdiv(N, tile_n))
    n_pad = num_tiles * tile_n

    if num_tiles == 1:
        # Fused fast path: one launch, no score-row HBM round trip.
        return pl.pallas_call(
            _fused_kernel,
            out_shape=jax.ShapeDtypeStruct((1, N), jnp.float32),
            in_specs=[
                pl.BlockSpec((N, D), lambda: (0, 0)),
                pl.BlockSpec((H, D), lambda: (0, 0)),
                pl.BlockSpec((1, H), lambda: (0, 0)),
                pl.BlockSpec((1, H), lambda: (0, 0)),
            ],
            out_specs=pl.BlockSpec((1, N), lambda: (0, 0)),
            compiler_params=pltpu.CompilerParams(
                vmem_limit_bytes=_VMEM_LIMIT_BYTES),
        )(x, w1t, b1, w2)

    # Pass 1: tiled, pipelined score computation ("parallel" over row tiles).
    # Tiles are multi-MiB by construction, so default double-buffering is
    # already HBM-roofline-bound (no pl.Buffered(3) needed).
    scores = pl.pallas_call(
        functools.partial(_scores_kernel, n_valid=N, tile_n=tile_n),
        out_shape=jax.ShapeDtypeStruct((1, n_pad), jnp.float32),
        grid=(num_tiles,),
        in_specs=[
            pl.BlockSpec((tile_n, D), lambda i: (i, 0)),   # streamed x tiles
            pl.BlockSpec((H, D), lambda i: (0, 0)),        # resident w1 (lane-dense)
            pl.BlockSpec((1, H), lambda i: (0, 0)),        # resident bias
            pl.BlockSpec((1, H), lambda i: (0, 0)),        # resident w2 row
        ],
        out_specs=pl.BlockSpec((1, tile_n), lambda i: (0, i)),  # lane-dense rows
        compiler_params=pltpu.CompilerParams(
            dimension_semantics=("parallel",),
            vmem_limit_bytes=_VMEM_LIMIT_BYTES,
        ),
    )(x, w1t, b1, w2)

    if n_pad <= softmax_single_block_max_lanes:
        # Pass 2 (small/medium N): global masked softmax over the score row.
        return pl.pallas_call(
            functools.partial(_softmax_kernel, n_valid=N),
            out_shape=jax.ShapeDtypeStruct((1, N), jnp.float32),
            in_specs=[pl.BlockSpec((1, n_pad), lambda: (0, 0))],
            out_specs=pl.BlockSpec((1, N), lambda: (0, 0)),
            compiler_params=pltpu.CompilerParams(
                vmem_limit_bytes=_VMEM_LIMIT_BYTES),
        )(scores)

    # Pass 2 (huge N): tiled two-pass softmax -- removes the
    # (1, n_pad)-must-fit-VMEM scaling cliff (matters most on v7x's 64 MiB).
    m_stat, l_stat = pl.pallas_call(
        _softmax_stats_kernel,
        out_shape=(jax.ShapeDtypeStruct((1, 1), jnp.float32),
                   jax.ShapeDtypeStruct((1, 1), jnp.float32)),
        grid=(num_tiles,),
        in_specs=[pl.BlockSpec((1, tile_n), lambda i: (0, i))],
        out_specs=(pl.BlockSpec((1, 1), lambda i: (0, 0)),
                   pl.BlockSpec((1, 1), lambda i: (0, 0))),
        compiler_params=pltpu.CompilerParams(
            dimension_semantics=("arbitrary",),
            vmem_limit_bytes=_VMEM_LIMIT_BYTES,
        ),
    )(scores)

    return pl.pallas_call(
        _softmax_norm_kernel,
        out_shape=jax.ShapeDtypeStruct((1, N), jnp.float32),
        grid=(num_tiles,),
        in_specs=[
            pl.BlockSpec((1, tile_n), lambda i: (0, i)),
            pl.BlockSpec((1, 1), lambda i: (0, 0)),
            pl.BlockSpec((1, 1), lambda i: (0, 0)),
        ],
        out_specs=pl.BlockSpec((1, tile_n), lambda i: (0, i)),
        compiler_params=pltpu.CompilerParams(
            dimension_semantics=("parallel",),
            vmem_limit_bytes=_VMEM_LIMIT_BYTES,
        ),
    )(scores, m_stat, l_stat)


def init_params(key, embedding_dim, hidden=16):
    """PyTorch-Linear-style uniform init (+/- 1/sqrt(fan_in)).

    Weights are stored pre-transposed for the wrapper: W1 as (D, 16) and the
    W2 row as (1, 16).
    """
    k1, k2, k3, k4 = jax.random.split(key, 4)
    bnd1 = 1.0 / jnp.sqrt(embedding_dim)
    bnd2 = 1.0 / jnp.sqrt(hidden)
    w1 = jax.random.uniform(k1, (embedding_dim, hidden), jnp.float32, -bnd1, bnd1)
    b1 = jax.random.uniform(k2, (1, hidden), jnp.float32, -bnd1, bnd1)
    w2 = jax.random.uniform(k3, (1, hidden), jnp.float32, -bnd2, bnd2)
    b2 = jax.random.uniform(k4, (1, 1), jnp.float32, -bnd2, bnd2)
    return w1, b1, w2, b2


def reference_forward(x, w1, b1, w2, b2):
    xf = x.astype(jnp.float32)
    w1f = w1.astype(jnp.float32)
    h = jnp.maximum(xf @ w1f + b1, 0.0)
    s = h @ w2.reshape(-1, 1) + b2          # b2 kept here; softmax cancels it
    return jax.nn.softmax(s.reshape(1, -1), axis=1)


if __name__ == "__main__":
    key = jax.random.PRNGKey(0)
    kx, kp, kx2 = jax.random.split(key, 3)

    # Typical module shapes: 8 group members, embedding_dim 32 -> fused path.
    N, D = 8, 32
    x = jax.random.normal(kx, (N, D), dtype=jnp.float32)
    w1, b1, w2, b2 = init_params(kp, D)

    weight = jax.block_until_ready(sub_user_interaction_attention(x, w1, b1, w2, b2))
    ref = reference_forward(x, w1, b1, w2, b2)
    assert weight.shape == (1, N)
    assert jnp.allclose(weight, ref, atol=1e-5, rtol=1e-5), (weight, ref)
    assert jnp.allclose(jnp.sum(weight), 1.0, atol=1e-5)

    # Larger input with all code paths exercised at small test shapes.
    N2, D2 = 1000, 64
    x2 = jax.random.normal(kx2, (N2, D2), dtype=jnp.float32)
    p2 = init_params(jax.random.fold_in(kp, 1), D2)
    ref_big = reference_forward(x2, *p2)

    # (a) Default auto-tiling: single big tile -> fused path.
    w_auto = jax.block_until_ready(sub_user_interaction_attention(x2, *p2))
    assert w_auto.shape == (1, N2)
    assert jnp.allclose(w_auto, ref_big, atol=1e-5, rtol=1e-5)
    assert jnp.allclose(jnp.sum(w_auto), 1.0, atol=1e-5)

    # (b) Forced multi-tile streaming (padded tail) + single-block softmax.
    w_multi = jax.block_until_ready(
        sub_user_interaction_attention(x2, *p2, max_tile_n=256))
    assert w_multi.shape == (1, N2)
    assert jnp.allclose(w_multi, ref_big, atol=1e-5, rtol=1e-5)

    # (c) Forced multi-tile streaming + tiled two-pass softmax.
    w_tiled = jax.block_until_ready(
        sub_user_interaction_attention(x2, *p2, max_tile_n=256,
                                       softmax_single_block_max_lanes=512))
    assert w_tiled.shape == (1, N2)
    assert jnp.allclose(w_tiled, ref_big, atol=1e-5, rtol=1e-5)

    # (d) bf16 x/w1 path (halves the dominant HBM read; f32 accumulation inside).
    w_bf16 = jax.block_until_ready(
        sub_user_interaction_attention(
            x.astype(jnp.bfloat16), w1.astype(jnp.bfloat16), b1, w2, b2))
    assert w_bf16.shape == (1, N)
    assert jnp.allclose(w_bf16, ref, atol=3e-2)

    print("KERNEL_OK")
</pallas_src>

<mosaic_0001>
module attributes {stable_mosaic.version = 11 : i64} {
  func.func @_fused_kernel(%arg0: memref<8x32xf32, #tpu.memory_space<vmem>>, %arg1: memref<16x32xf32, #tpu.memory_space<vmem>>, %arg2: memref<1x16xf32, #tpu.memory_space<vmem>>, %arg3: memref<1x16xf32, #tpu.memory_space<vmem>>, %arg4: memref<1x8xf32, #tpu.memory_space<vmem>>) attributes {dimension_semantics = [], scalar_prefetch = 0 : i64, scratch_operands = 0 : i64, tpu.core_type = #tpu.core_type<tc>} {
    %c0 = arith.constant 0 : index
    %c0_0 = arith.constant 0 : index
    %0 = vector.load %arg0[%c0, %c0_0] : memref<8x32xf32, #tpu.memory_space<vmem>>, vector<8x32xf32>
    %c0_1 = arith.constant 0 : index
    %c0_2 = arith.constant 0 : index
    %1 = vector.load %arg1[%c0_1, %c0_2] : memref<16x32xf32, #tpu.memory_space<vmem>>, vector<16x32xf32>
    %c0_3 = arith.constant 0 : index
    %c0_4 = arith.constant 0 : index
    %2 = vector.load %arg2[%c0_3, %c0_4] : memref<1x16xf32, #tpu.memory_space<vmem>>, vector<1x16xf32>
    %c0_5 = arith.constant 0 : index
    %c0_6 = arith.constant 0 : index
    %3 = vector.load %arg3[%c0_5, %c0_6] : memref<1x16xf32, #tpu.memory_space<vmem>>, vector<1x16xf32>
    %cst = arith.constant dense<0.000000e+00> : vector<8x16xf32>
    %4 = tpu.matmul %0, %1, %cst {dimension_numbers = #tpu.dot_dimension_numbers<[1], [1], [0], [0], [0, 0, 1, 0], [], []>} : vector<8x32xf32>, vector<16x32xf32>, vector<8x16xf32> -> vector<8x16xf32>
    %5 = vector.broadcast %2 : vector<1x16xf32> to vector<8x16xf32>
    %6 = arith.addf %4, %5 : vector<8x16xf32>
    %cst_7 = arith.constant 0.000000e+00 : f32
    %7 = vector.broadcast %cst_7 : f32 to vector<8x16xf32>
    %8 = arith.maximumf %6, %7 : vector<8x16xf32>
    %cst_8 = arith.constant dense<0.000000e+00> : vector<1x8xf32>
    %9 = tpu.matmul %3, %8, %cst_8 {dimension_numbers = #tpu.dot_dimension_numbers<[1], [1], [0], [0], [0, 0, 1, 0], [], []>} : vector<1x16xf32>, vector<8x16xf32>, vector<1x8xf32> -> vector<1x8xf32>
    %cst_9 = arith.constant dense<0xFF800000> : vector<1xf32>
    %10 = vector.multi_reduction <maximumf>, %9, %cst_9 [1] : vector<1x8xf32> to vector<1xf32>
    %11 = vector.shape_cast %10 : vector<1xf32> to vector<1x1xf32>
    %12 = vector.broadcast %11 : vector<1x1xf32> to vector<1x8xf32>
    %13 = arith.subf %9, %12 : vector<1x8xf32>
    %14 = math.exp %13 : vector<1x8xf32>
    %cst_10 = arith.constant dense<0.000000e+00> : vector<1xf32>
    %15 = vector.multi_reduction <add>, %14, %cst_10 [1] : vector<1x8xf32> to vector<1xf32>
    %16 = vector.shape_cast %15 : vector<1xf32> to vector<1x1xf32>
    %17 = tpu.reciprocal %16 : vector<1x1xf32> -> vector<1x1xf32>
    %18 = vector.broadcast %17 : vector<1x1xf32> to vector<1x8xf32>
    %19 = arith.mulf %14, %18 : vector<1x8xf32>
    %c0_11 = arith.constant 0 : index
    %c0_12 = arith.constant 0 : index
    %20 = vector.load %arg4[%c0_11, %c0_12] : memref<1x8xf32, #tpu.memory_space<vmem>>, vector<1x8xf32>
    tpu.vector_store %arg4[%c0_11, %c0_12], %19 {strides = array<i32>} : memref<1x8xf32, #tpu.memory_space<vmem>>, vector<1x8xf32>,
    return
  }
}

</mosaic_0001>

<llo_original>
// kernel: tpu_custom_call.1
$region0: #{tpu_custom_call.1}
  #allocation0 [shape = 'u32[]', space=smem, size = 0x4, offset = 0x4, fixed_abs, tag = 'smem constant byte address 0x4 - core index']
  #allocation1 [shape = 'u32[144,128]{1,0:T(1,128)}', space=vmem, size = 0x12000, scoped, tag = 'internal scratch']
  %s0 = inlined_call_operand.hbm [shape: f32[8,32], index: 0, kind: input, shape index: {}]
  %s1 = inlined_call_operand.hbm [shape: f32[16,32], index: 1, kind: input, shape index: {}]
  %s2 = inlined_call_operand.vmem [shape: f32[1,16], index: 2, kind: input, shape index: {}]
  %s3 = inlined_call_operand.vmem [shape: f32[1,16], index: 3, kind: input, shape index: {}]
  %s4 = inlined_call_operand.hbm [shape: f32[1,8], index: 4, kind: output, shape index: {}]
  %s5 = sld [smem:[#allocation0]]
  $region34: #{tpu_custom_call.1} parent=0
    _
  %s7 = ssub.s32 1, %s5
  %s8 = scalar_select 0, %s7, %s5
  $region1: #{tpu_custom_call.1} parent=0
    #allocation2 [shape = 'u8[4096]{0}', space=vmem, size = 0x1000, scoped, tag = 'input window, operand 0, single buffered']
    #allocation3 [shape = 's32[1]{0}', space=sflag, size = 0x4, scoped, tag = 'scoped memory for tpu_custom_call.1']
    #allocation4 [shape = 's32[1]{0}', space=sflag, size = 0x4, scoped, tag = 'scoped memory for tpu_custom_call.1']
    #allocation5 [shape = 'u8[8192]{0}', space=vmem, size = 0x2000, scoped, tag = 'input window, operand 1, single buffered']
    #allocation6 [shape = 's32[1]{0}', space=sflag, size = 0x4, scoped, tag = 'scoped memory for tpu_custom_call.1']
    #allocation7 [shape = 'u8[512]{0}', space=vmem, size = 0x400, scoped, tag = 'output window, operand 0, single buffered']
    %9 = vsyncpa [#allocation3], 0
    %10 = vsyncpa [#allocation6], 0
    %11 = vsyncpa [#allocation4], 0
    // Predicated region
    $region2: #{tpu_custom_call.1} parent=1 // pred_check
      _
    $region3: #{tpu_custom_call.1} parent=1 // pred_check_branch
      %13 = sbr.rel (0) target = $region5
    $region4: #{tpu_custom_call.1} parent=1 // pred_region
      %s15 = ssub.s32 128, 128
      %16 = vsyncadd [#allocation3], %s15
      %s18 = sshll.u32 [#allocation2], 4
      %s19 = int_to_ptr.vmem [resolvable:$true] %s18
      %21 = dma.hbm_to_vmem [thread:$0]  %s0, 128, %s19, [#allocation3]
    $region5: #{tpu_custom_call.1} parent=1 // pred_fallthru
      _
    // Predicated region
    $region6: #{tpu_custom_call.1} parent=1 // pred_check
      _
    $region7: #{tpu_custom_call.1} parent=1 // pred_check_branch
      %23 = sbr.rel (0) target = $region9
    $region8: #{tpu_custom_call.1} parent=1 // pred_region
      %s25 = ssub.s32 256, 256
      %26 = vsyncadd [#allocation6], %s25
      %s27 = sshll.u32 [#allocation5], 4
      %s28 = int_to_ptr.vmem [resolvable:$true] %s27
      %33 = dma.hbm_to_vmem [thread:$0]  %s1, 256, %s28, [#allocation6], 128, 128, 8
    $region9: #{tpu_custom_call.1} parent=1 // pred_fallthru
      _
    // Predicated region
    $region10: #{tpu_custom_call.1} parent=1 // pred_check
      _
    $region11: #{tpu_custom_call.1} parent=1 // pred_check_branch
      %35 = sbr.rel (0) target = $region13
    $region12: #{tpu_custom_call.1} parent=1 // pred_region
      _
    $region13: #{tpu_custom_call.1} parent=1 // pred_fallthru
      _
    // Predicated region
    $region14: #{tpu_custom_call.1} parent=1 // pred_check
      _
    $region15: #{tpu_custom_call.1} parent=1 // pred_check_branch
      %37 = sbr.rel (0) target = $region17
    $region16: #{tpu_custom_call.1} parent=1 // pred_region
      _
    $region17: #{tpu_custom_call.1} parent=1 // pred_fallthru
      _
    // Predicated region
    $region18: #{tpu_custom_call.1} parent=1 // pred_check
      _
    $region19: #{tpu_custom_call.1} parent=1 // pred_check_branch
      %39 = sbr.rel (0) target = $region21
    $region20: #{tpu_custom_call.1} parent=1 // pred_region
      %40 = dma.done [#allocation3], 128
    $region21: #{tpu_custom_call.1} parent=1 // pred_fallthru
      _
    // Predicated region
    $region22: #{tpu_custom_call.1} parent=1 // pred_check
      _
    $region23: #{tpu_custom_call.1} parent=1 // pred_check_branch
      %42 = sbr.rel (0) target = $region25
    $region24: #{tpu_custom_call.1} parent=1 // pred_region
      %43 = dma.done [#allocation6], 256
    $region25: #{tpu_custom_call.1} parent=1 // pred_fallthru
      _
    %v44 = vld [vmem:[#allocation2] sm:$0xff]
    %v45 = vld [vmem:[#allocation5] sm:$0xff]
    %v46 = vld [vmem:[#allocation5 + $0x8] sm:$0xff]
    %v47 = vld [vmem:[%s2] sm:$0x1]
    %v48 = vld [vmem:[%s3] sm:$0x1]
    %v50 = vlaneseq
    %v51 = vshrl.u32 %v50, 7
    %v52 = vsub.s32 0, %v51
    %v53 = vrot.slane %v47, %v52
    %vm55 = vcmask 261120
    %v57 = vsel %vm55, %v44, 0
    %v60 = vsel %vm55, %v45, 0
    %v63 = vsel %vm55, %v46, 0
    %65 = vmatprep.subr.mxu0 0.0
    %66 = vmatpush1.xpose.msra.mxu0 %v60
    %67 = vmatprep.subr.mxu0 0.0
    %68 = vmatpush1.xpose.msra.mxu0 %v63
    %69 = vmatprep.subr.mxu0 0.0
    %70 = vmatpush1.xpose.msra.mxu0 0.0
    %71 = vmatprep.subr.mxu0 0.0
    %72 = vmatpush1.xpose.msra.mxu0 0.0
    %73 = vmatprep.subr.mxu0 0.0
    %74 = vmatpush1.xpose.msra.mxu0 0.0
    %75 = vmatprep.subr.mxu0 0.0
    %76 = vmatpush1.xpose.msra.mxu0 0.0
    %77 = vmatprep.subr.mxu0 0.0
    %78 = vmatpush1.xpose.msra.mxu0 0.0
    %79 = vmatprep.subr.mxu0 0.0
    %80 = vmatpush1.xpose.msra.mxu0 0.0
    %81 = vmatprep.subr.mxu0 0.0
    %82 = vmatpush1.xpose.msra.mxu0 0.0
    %83 = vmatprep.subr.mxu0 0.0
    %84 = vmatpush1.xpose.msra.mxu0 0.0
    %85 = vmatprep.subr.mxu0 0.0
    %86 = vmatpush1.xpose.msra.mxu0 0.0
    %87 = vmatprep.subr.mxu0 0.0
    %88 = vmatpush1.xpose.msra.mxu0 0.0
    %89 = vmatprep.subr.mxu0 0.0
    %90 = vmatpush1.xpose.msra.mxu0 0.0
    %91 = vmatprep.subr.mxu0 0.0
    %92 = vmatpush1.xpose.msra.mxu0 0.0
    %93 = vmatprep.subr.mxu0 0.0
    %94 = vmatpush1.xpose.msra.mxu0 0.0
    %95 = vmatprep.subr.mxu0 0.0
    %96 = vmatpush1.xpose.msra.mxu0 0.0
    %97 = vmatprep.subr.mxu0 0.0
    %98 = vmatpush1.xpose.msra.mxu0 0.0
    %99 = vmatprep.subr.mxu0 0.0
    %100 = vmatpush1.xpose.msra.mxu0 0.0
    %101 = vmatprep.subr.mxu0 0.0
    %102 = vmatpush1.xpose.msra.mxu0 0.0
    %103 = vmatprep.subr.mxu0 0.0
    %104 = vmatpush1.xpose.msra.mxu0 0.0
    %105 = vmatprep.subr.mxu0 0.0
    %106 = vmatpush1.xpose.msra.mxu0 0.0
    %107 = vmatprep.subr.mxu0 0.0
    %108 = vmatpush1.xpose.msra.mxu0 0.0
    %109 = vmatprep.subr.mxu0 0.0
    %110 = vmatpush1.xpose.msra.mxu0 0.0
    %111 = vmatprep.subr.mxu0 0.0
    %112 = vmatpush1.xpose.msra.mxu0 0.0
    %113 = vmatprep.subr.mxu0 0.0
    %114 = vmatpush1.xpose.msra.mxu0 0.0
    %115 = vmatprep.subr.mxu0 0.0
    %116 = vmatpush1.xpose.msra.mxu0 0.0
    %117 = vmatprep.subr.mxu0 0.0
    %118 = vmatpush1.xpose.msra.mxu0 0.0
    %119 = vmatprep.subr.mxu0 0.0
    %120 = vmatpush1.xpose.msra.mxu0 0.0
    %121 = vmatprep.subr.mxu0 0.0
    %122 = vmatpush1.xpose.msra.mxu0 0.0
    %123 = vmatprep.subr.mxu0 0.0
    %124 = vmatpush1.xpose.msra.mxu0 0.0
    %125 = vmatprep.subr.mxu0 0.0
    %126 = vmatpush1.xpose.msra.mxu0 0.0
    %127 = vmatprep.subr.mxu0 0.0
    %128 = vmatpush1.xpose.msra.mxu0 0.0
    %129 = vmatprep.mubr.f32.mxu0 0.0
    %130 = vmatmul.mubr.f32.gmra.mrb[0].mxu0 %v57
    %v131 = vpop.f32.mrb[0].mxu0
    %v132 = vadd.f32 %v53, %v131
    %v133 = vpop.f32.mrb[0].mxu0
    %134 = vdwg.mxu0
    %v135 = vmax.f32 %v132, 0.0
    %vm136 = vcmask 130048
    %v138 = vsel %vm136, %v48, 0
    %v141 = vsel %vm136, %v135, 0
    %143 = vmatprep.subr.mxu0 0.0
    %144 = vmatpush1.xpose.msra.mxu0 %v141
    %145 = vmatprep.subr.mxu0 0.0
    %146 = vmatpush1.xpose.msra.mxu0 0.0
    %147 = vmatprep.subr.mxu0 0.0
    %148 = vmatpush1.xpose.msra.mxu0 0.0
    %149 = vmatprep.subr.mxu0 0.0
    %150 = vmatpush1.xpose.msra.mxu0 0.0
    %151 = vmatprep.subr.mxu0 0.0
    %152 = vmatpush1.xpose.msra.mxu0 0.0
    %153 = vmatprep.subr.mxu0 0.0
    %154 = vmatpush1.xpose.msra.mxu0 0.0
    %155 = vmatprep.subr.mxu0 0.0
    %156 = vmatpush1.xpose.msra.mxu0 0.0
    %157 = vmatprep.subr.mxu0 0.0
    %158 = vmatpush1.xpose.msra.mxu0 0.0
    %159 = vmatprep.subr.mxu0 0.0
    %160 = vmatpush1.xpose.msra.mxu0 0.0
    %161 = vmatprep.subr.mxu0 0.0
    %162 = vmatpush1.xpose.msra.mxu0 0.0
    %163 = vmatprep.subr.mxu0 0.0
    %164 = vmatpush1.xpose.msra.mxu0 0.0
    %165 = vmatprep.subr.mxu0 0.0
    %166 = vmatpush1.xpose.msra.mxu0 0.0
    %167 = vmatprep.subr.mxu0 0.0
    %168 = vmatpush1.xpose.msra.mxu0 0.0
    %169 = vmatprep.subr.mxu0 0.0
    %170 = vmatpush1.xpose.msra.mxu0 0.0
    %171 = vmatprep.subr.mxu0 0.0
    %172 = vmatpush1.xpose.msra.mxu0 0.0
    %173 = vmatprep.subr.mxu0 0.0
    %174 = vmatpush1.xpose.msra.mxu0 0.0
    %175 = vmatprep.subr.mxu0 0.0
    %176 = vmatpush1.xpose.msra.mxu0 0.0
    %177 = vmatprep.subr.mxu0 0.0
    %178 = vmatpush1.xpose.msra.mxu0 0.0
    %179 = vmatprep.subr.mxu0 0.0
    %180 = vmatpush1.xpose.msra.mxu0 0.0
    %181 = vmatprep.subr.mxu0 0.0
    %182 = vmatpush1.xpose.msra.mxu0 0.0
    %183 = vmatprep.subr.mxu0 0.0
    %184 = vmatpush1.xpose.msra.mxu0 0.0
    %185 = vmatprep.subr.mxu0 0.0
    %186 = vmatpush1.xpose.msra.mxu0 0.0
    %187 = vmatprep.subr.mxu0 0.0
    %188 = vmatpush1.xpose.msra.mxu0 0.0
    %189 = vmatprep.subr.mxu0 0.0
    %190 = vmatpush1.xpose.msra.mxu0 0.0
    %191 = vmatprep.subr.mxu0 0.0
    %192 = vmatpush1.xpose.msra.mxu0 0.0
    %193 = vmatprep.subr.mxu0 0.0
    %194 = vmatpush1.xpose.msra.mxu0 0.0
    %195 = vmatprep.subr.mxu0 0.0
    %196 = vmatpush1.xpose.msra.mxu0 0.0
    %197 = vmatprep.subr.mxu0 0.0
    %198 = vmatpush1.xpose.msra.mxu0 0.0
    %199 = vmatprep.subr.mxu0 0.0
    %200 = vmatpush1.xpose.msra.mxu0 0.0
    %201 = vmatprep.subr.mxu0 0.0
    %202 = vmatpush1.xpose.msra.mxu0 0.0
    %203 = vmatprep.subr.mxu0 0.0
    %204 = vmatpush1.xpose.msra.mxu0 0.0
    %205 = vmatprep.subr.mxu0 0.0
    %206 = vmatpush1.xpose.msra.mxu0 0.0
    %207 = vmatprep.mubr.f32.mxu0 0.0
    %208 = vmatmul.mubr.f32.gmra.mrb[0].mxu0 %v138
    %v209 = vpop.f32.mrb[0].mxu0
    %v210 = vadd.f32 0.0, %v209
    %v211 = vpop.f32.mrb[0].mxu0
    %212 = vdwg.mxu0
    %vm213 = vcmask 57344
    %v214 = vsel %vm213, %v210, -inf
    %215 = vmax.xlane.f32.xlu0 %v214
    %v216 = vpop.xlane.xlu0 %215
    %v217 = vsub.f32 %v210, %v216
    %v218 = vmul.f32 %v217, 1.442695
    %v219 = vpow.pop %v218
    %v220 = vsel %vm213, %v219, 0.0
    %221 = vadd.xlane.f32.xlu0 %v220
    %v222 = vpop.xlane.xlu0 %221
    %v223 = vrcp.pop %v222
    %v224 = vmul.f32 %v219, %v223
    %225 = vst.msk [vmem:[#allocation7] sm:$0x1] %vm213, %v224
    // Predicated region
    $region26: #{tpu_custom_call.1} parent=1 // pred_check
      _
    $region27: #{tpu_custom_call.1} parent=1 // pred_check_branch
      %227 = sbr.rel (0) target = $region29
    $region28: #{tpu_custom_call.1} parent=1 // pred_region
      %s229 = ssub.s32 16, 16
      %230 = vsyncadd [#allocation4], %s229
      %s232 = sshll.u32 [#allocation7], 4
      %s233 = int_to_ptr.vmem [resolvable:$true] %s232
      %235 = dma.vmem_to_hbm [thread:$0]  %s233, 16, %s4, [#allocation4]
    $region29: #{tpu_custom_call.1} parent=1 // pred_fallthru
      _
    // Predicated region
    $region30: #{tpu_custom_call.1} parent=1 // pred_check
      _
    $region31: #{tpu_custom_call.1} parent=1 // pred_check_branch
      %237 = sbr.rel (0) target = $region33
    $region32: #{tpu_custom_call.1} parent=1 // pred_region
      %238 = dma.done [#allocation4], 16
    $region33: #{tpu_custom_call.1} parent=1 // pred_fallthru
      _
    %239 = vsyncpa [#allocation3], 1
    %240 = vsyncpa [#allocation6], 1
    %241 = vsyncpa [#allocation4], 1

</llo_original>
